<compile_context>
chip_gen: v5e
topology: v5e:2x2
jax: 0.10.0
libtpu: 0.0.40
codegen_flags: <defaults>
</compile_context>

<pallas_src>
import jax
import jax.numpy as jnp
from jax import lax
from jax.experimental import pallas as pl
from jax.experimental.pallas import tpu as pltpu

_BN_EPS = 0.001


def _fc_bn_relu_kernel(x_ref, w_ref, gamma_ref, beta_ref, o_ref):
    # Grid = (j: Cout blocks ["parallel"], k: Cin blocks ["arbitrary" reduction]).
    # o_ref's block index depends only on j -> resident across k -> accumulator.
    k = pl.program_id(1)

    @pl.when(k == 0)
    def _init():
        o_ref[...] = jnp.zeros_like(o_ref)

    # Linear (bias dropped: it cancels inside training-mode BN mean subtraction).
    o_ref[...] += jnp.dot(
        x_ref[...], w_ref[...], preferred_element_type=jnp.float32
    )

    @pl.when(k == pl.num_programs(1) - 1)
    def _finalize():
        z = o_ref[...]                                       # (N, tile_n) f32
        inv_n = 1.0 / z.shape[0]
        # Single pass over z for both first and second moments.
        mean = jnp.sum(z, axis=0, keepdims=True) * inv_n     # (1, tile_n)
        mean_sq = jnp.sum(z * z, axis=0, keepdims=True) * inv_n
        var = jnp.maximum(mean_sq - mean * mean, 0.0)        # clamp cancellation
        scale = gamma_ref[...] * lax.rsqrt(var + _BN_EPS)    # (1, tile_n)
        shift = beta_ref[...] - mean * scale
        y = z * scale + shift                                # 2 VPU ops / elem
        o_ref[...] = jnp.maximum(y, 0.0)                     # ReLU, in place


def _round_up(x, m):
    return (x + m - 1) // m * m


def _tpu_info():
    """(vmem_capacity_bytes, device_kind lowercase) with safe fallbacks."""
    cap = 128 << 20
    try:
        info = pltpu.get_tpu_info()
        cap = int(getattr(info, "vmem_capacity_bytes", cap))
    except Exception:
        pass
    kind = ""
    try:
        kind = jax.devices()[0].device_kind.lower()
    except Exception:
        pass
    return cap, kind


def _footprint(N, tile_n, tile_k, in_bytes):
    """Double-buffered VMEM footprint of one pipeline stage."""
    return (2 * N * tile_k * in_bytes          # x block
            + 2 * tile_k * tile_n * in_bytes   # w block
            + 2 * N * tile_n * 4               # out block (f32, also accumulator)
            + 4 * tile_n * 4)                  # gamma + beta rows


def _choose_tiles(N, Cin_p, Cout_p, in_bytes, budget, min_j_blocks):
    """Pick (tile_n, tile_k) minimising HBM traffic within the VMEM budget."""
    cands_n = [t for t in (512, 256, 128) if Cout_p % t == 0]
    cands_k = sorted(
        {t for t in (Cin_p, 1024, 512, 256, 128) if t <= Cin_p and Cin_p % t == 0},
        reverse=True,
    )
    best_key, best = None, None
    for tn in cands_n:
        n_j = Cout_p // tn
        # Keep >= min_j_blocks "parallel" blocks (megacore) when a smaller tile exists.
        if n_j < min_j_blocks and tn != cands_n[-1]:
            continue
        for tk in cands_k:
            if _footprint(N, tn, tk, in_bytes) > budget:
                continue
            # tile_k == Cin_p => x block index is constant => x fetched exactly once.
            x_reads = 1 if tk == Cin_p else n_j
            traffic = (x_reads * N * Cin_p * in_bytes
                       + Cin_p * Cout_p * in_bytes
                       + N * Cout_p * 4)
            key = (traffic, -tk, -tn)
            if best_key is None or key < best_key:
                best_key, best = key, (tn, tk)
    if best is None:
        # Smallest tiles; huge N may still exceed VMEM until N is tileable (see TODO).
        best = (cands_n[-1], cands_k[-1])
    return best


def basic_fc_bn(x, w_t, b, gamma, beta, *, use_bf16_matmul=False):
    """Fused Linear -> BatchNorm1d(training stats, eps=1e-3) -> ReLU.

    x:     (N, Cin)    float32
    w_t:   (Cin, Cout) pre-transposed nn.Linear weight
    b:     (1, Cout)   nn.Linear bias; accepted for API parity but cancelled
                       exactly by the training-mode BN mean subtraction.
    gamma, beta: (1, Cout) BN affine parameters.
    Returns (N, Cout) float32.
    """
    del b  # mean(z + b) - (z + b) == mean(z) - z under batch statistics
    N, Cin = x.shape
    _, Cout = w_t.shape

    in_dtype = jnp.bfloat16 if use_bf16_matmul else jnp.float32
    in_bytes = 2 if use_bf16_matmul else 4

    # Cast first so the (possible) pad operates on the narrow dtype -> one pass.
    if use_bf16_matmul:
        x = x.astype(in_dtype)
        w_t = w_t.astype(in_dtype)

    Cin_p, Cout_p = _round_up(Cin, 128), _round_up(Cout, 128)
    if Cin_p != Cin:
        x = jnp.pad(x, ((0, 0), (0, Cin_p - Cin)))
        w_t = jnp.pad(w_t, ((0, Cin_p - Cin), (0, 0)))
    if Cout_p != Cout:
        w_t = jnp.pad(w_t, ((0, 0), (0, Cout_p - Cout)))
        gamma = jnp.pad(gamma, ((0, 0), (0, Cout_p - Cout)), constant_values=1.0)
        beta = jnp.pad(beta, ((0, 0), (0, Cout_p - Cout)))

    vmem_cap, kind = _tpu_info()
    multi_tc = any(t in kind for t in ("v7", "v4", "v5p"))   # >1 TC shares the grid
    min_j_blocks = 2 if multi_tc else 1

    budget = int(vmem_cap * 0.6)
    tile_n, tile_k = _choose_tiles(N, Cin_p, Cout_p, in_bytes, budget, min_j_blocks)
    grid = (Cout_p // tile_n, Cin_p // tile_k)

    foot = _footprint(N, tile_n, tile_k, in_bytes)
    vmem_limit = max(32 << 20, min(int(foot * 1.3) + (4 << 20), int(vmem_cap * 0.85)))

    x_reads = 1 if tile_k == Cin_p else grid[0]
    cost = pl.CostEstimate(
        flops=2 * N * Cin_p * Cout_p,
        transcendentals=0,
        bytes_accessed=(x_reads * N * Cin_p * in_bytes
                        + Cin_p * Cout_p * in_bytes
                        + N * Cout_p * 4),
    )

    out = pl.pallas_call(
        _fc_bn_relu_kernel,
        out_shape=jax.ShapeDtypeStruct((N, Cout_p), jnp.float32),
        grid=grid,
        in_specs=[
            # x: resident (fetched once) when tile_k == Cin_p.
            pl.BlockSpec((N, tile_k), lambda j, k: (0, k)),
            pl.BlockSpec((tile_k, tile_n), lambda j, k: (k, j)),   # w_t
            pl.BlockSpec((1, tile_n), lambda j, k: (0, j)),        # gamma
            pl.BlockSpec((1, tile_n), lambda j, k: (0, j)),        # beta
        ],
        out_specs=pl.BlockSpec((N, tile_n), lambda j, k: (0, j)),  # accumulator
        compiler_params=pltpu.CompilerParams(
            dimension_semantics=("parallel", "arbitrary"),
            vmem_limit_bytes=vmem_limit,
        ),
        cost_estimate=cost,
    )(x, w_t, gamma, beta)

    return out[:, :Cout]


def reference(x, w_t, b, gamma, beta, eps=_BN_EPS):
    z = x @ w_t + b
    mean = z.mean(axis=0, keepdims=True)
    var = ((z - mean) ** 2).mean(axis=0, keepdims=True)  # biased (BN training fwd)
    y = (z - mean) / jnp.sqrt(var + eps) * gamma + beta
    return jnp.maximum(y, 0.0)


if __name__ == "__main__":
    # Small shapes consistent with the module: batch=8, in_channels=16, out_channels=32
    N, Cin, Cout = 8, 16, 32
    key = jax.random.PRNGKey(0)
    kx, kw, kb, kg, kbeta = jax.random.split(key, 5)

    x = jax.random.normal(kx, (N, Cin), dtype=jnp.float32)

    # Deterministic synthetic parameters (nn.Linear-style init; BN at defaults).
    bound = 1.0 / jnp.sqrt(Cin)
    w = jax.random.uniform(kw, (Cout, Cin), minval=-bound, maxval=bound,
                           dtype=jnp.float32)            # nn.Linear weight (Cout, Cin)
    w_t = jnp.transpose(w)                               # pre-transposed for the kernel
    b = jax.random.uniform(kb, (1, Cout), minval=-bound, maxval=bound,
                           dtype=jnp.float32)            # nn.Linear bias
    gamma = jnp.ones((1, Cout), dtype=jnp.float32)       # BN weight init
    beta = jnp.zeros((1, Cout), dtype=jnp.float32)       # BN bias init

    out = basic_fc_bn(x, w_t, b, gamma, beta)
    out = jax.block_until_ready(out)

    ref = reference(x, w_t, b, gamma, beta)
    assert out.shape == (N, Cout)
    assert jnp.allclose(out, ref, atol=1e-4, rtol=1e-4), "mismatch vs reference"

    print("KERNEL_OK")
</pallas_src>

<mosaic_0001>
module attributes {stable_mosaic.version = 11 : i64} {
  func.func @_fc_bn_relu_kernel(%arg0: i32, %arg1: i32, %arg2: memref<8x128xf32, #tpu.memory_space<vmem>>, %arg3: memref<128x128xf32, #tpu.memory_space<vmem>>, %arg4: memref<1x128xf32, #tpu.memory_space<vmem>>, %arg5: memref<1x128xf32, #tpu.memory_space<vmem>>, %arg6: memref<8x128xf32, #tpu.memory_space<vmem>>) attributes {dimension_semantics = [#tpu.dimension_semantics<parallel>, #tpu.dimension_semantics<arbitrary>], iteration_bounds = array<i64: 1, 1>, scalar_prefetch = 0 : i64, scratch_operands = 0 : i64, tpu.core_type = #tpu.core_type<tc>, window_params = [{transform_indices = @transform_0, window_bounds = array<i64: 8, 128>}, {transform_indices = @transform_1, window_bounds = array<i64: 128, 128>}, {transform_indices = @transform_2, window_bounds = array<i64: 1, 128>}, {transform_indices = @transform_3, window_bounds = array<i64: 1, 128>}, {transform_indices = @transform_4, window_bounds = array<i64: 8, 128>}]} {
    %c0_i32 = arith.constant 0 : i32
    %0 = arith.cmpi eq, %arg1, %c0_i32 : i32
    %1 = arith.extui %0 : i1 to i32
    %c0_i32_0 = arith.constant 0 : i32
    %2 = arith.cmpi ne, %1, %c0_i32_0 : i32
    scf.if %2 {
      %cst_10 = arith.constant 0.000000e+00 : f32
      %12 = vector.broadcast %cst_10 : f32 to vector<8x128xf32>
      %c0_11 = arith.constant 0 : index
      %c0_12 = arith.constant 0 : index
      %13 = vector.load %arg6[%c0_11, %c0_12] : memref<8x128xf32, #tpu.memory_space<vmem>>, vector<8x128xf32>
      tpu.vector_store %arg6[%c0_11, %c0_12], %12 {strides = array<i32>} : memref<8x128xf32, #tpu.memory_space<vmem>>, vector<8x128xf32>,
    } else {
    }
    %c0 = arith.constant 0 : index
    %c0_1 = arith.constant 0 : index
    %3 = vector.load %arg6[%c0, %c0_1] : memref<8x128xf32, #tpu.memory_space<vmem>>, vector<8x128xf32>
    %c0_2 = arith.constant 0 : index
    %c0_3 = arith.constant 0 : index
    %4 = vector.load %arg2[%c0_2, %c0_3] : memref<8x128xf32, #tpu.memory_space<vmem>>, vector<8x128xf32>
    %c0_4 = arith.constant 0 : index
    %c0_5 = arith.constant 0 : index
    %5 = vector.load %arg3[%c0_4, %c0_5] : memref<128x128xf32, #tpu.memory_space<vmem>>, vector<128x128xf32>
    %cst = arith.constant dense<0.000000e+00> : vector<8x128xf32>
    %6 = tpu.matmul %4, %5, %cst {dimension_numbers = #tpu.dot_dimension_numbers<[1], [0], [0], [1], [0, 0, 1, 1], [], []>} : vector<8x128xf32>, vector<128x128xf32>, vector<8x128xf32> -> vector<8x128xf32>
    %7 = arith.addf %3, %6 : vector<8x128xf32>
    %c0_6 = arith.constant 0 : index
    %c0_7 = arith.constant 0 : index
    %8 = vector.load %arg6[%c0_6, %c0_7] : memref<8x128xf32, #tpu.memory_space<vmem>>, vector<8x128xf32>
    tpu.vector_store %arg6[%c0_6, %c0_7], %7 {strides = array<i32>} : memref<8x128xf32, #tpu.memory_space<vmem>>, vector<8x128xf32>,
    %c0_i32_8 = arith.constant 0 : i32
    %9 = arith.cmpi eq, %arg1, %c0_i32_8 : i32
    %10 = arith.extui %9 : i1 to i32
    %c0_i32_9 = arith.constant 0 : i32
    %11 = arith.cmpi ne, %10, %c0_i32_9 : i32
    scf.if %11 {
      %c0_10 = arith.constant 0 : index
      %c0_11 = arith.constant 0 : index
      %12 = vector.load %arg6[%c0_10, %c0_11] : memref<8x128xf32, #tpu.memory_space<vmem>>, vector<8x128xf32>
      %cst_12 = arith.constant dense<0.000000e+00> : vector<128xf32>
      %13 = vector.multi_reduction <add>, %12, %cst_12 [0] : vector<8x128xf32> to vector<128xf32>
      %14 = vector.shape_cast %13 : vector<128xf32> to vector<1x128xf32>
      %cst_13 = arith.constant 1.250000e-01 : f32
      %15 = vector.broadcast %cst_13 : f32 to vector<1x128xf32>
      %16 = arith.mulf %14, %15 : vector<1x128xf32>
      %17 = arith.mulf %12, %12 : vector<8x128xf32>
      %cst_14 = arith.constant dense<0.000000e+00> : vector<128xf32>
      %18 = vector.multi_reduction <add>, %17, %cst_14 [0] : vector<8x128xf32> to vector<128xf32>
      %19 = vector.shape_cast %18 : vector<128xf32> to vector<1x128xf32>
      %cst_15 = arith.constant 1.250000e-01 : f32
      %20 = vector.broadcast %cst_15 : f32 to vector<1x128xf32>
      %21 = arith.mulf %19, %20 : vector<1x128xf32>
      %22 = arith.mulf %16, %16 : vector<1x128xf32>
      %23 = arith.subf %21, %22 : vector<1x128xf32>
      %cst_16 = arith.constant 0.000000e+00 : f32
      %24 = vector.broadcast %cst_16 : f32 to vector<1x128xf32>
      %25 = arith.maximumf %23, %24 : vector<1x128xf32>
      %c0_17 = arith.constant 0 : index
      %c0_18 = arith.constant 0 : index
      %26 = vector.load %arg4[%c0_17, %c0_18] : memref<1x128xf32, #tpu.memory_space<vmem>>, vector<1x128xf32>
      %cst_19 = arith.constant 1.000000e-03 : f32
      %27 = vector.broadcast %cst_19 : f32 to vector<1x128xf32>
      %28 = arith.addf %25, %27 : vector<1x128xf32>
      %29 = math.rsqrt %28 : vector<1x128xf32>
      %30 = arith.mulf %26, %29 : vector<1x128xf32>
      %c0_20 = arith.constant 0 : index
      %c0_21 = arith.constant 0 : index
      %31 = vector.load %arg5[%c0_20, %c0_21] : memref<1x128xf32, #tpu.memory_space<vmem>>, vector<1x128xf32>
      %32 = arith.mulf %16, %30 : vector<1x128xf32>
      %33 = arith.subf %31, %32 : vector<1x128xf32>
      %34 = vector.broadcast %30 : vector<1x128xf32> to vector<8x128xf32>
      %35 = arith.mulf %12, %34 : vector<8x128xf32>
      %36 = vector.broadcast %33 : vector<1x128xf32> to vector<8x128xf32>
      %37 = arith.addf %35, %36 : vector<8x128xf32>
      %cst_22 = arith.constant 0.000000e+00 : f32
      %38 = vector.broadcast %cst_22 : f32 to vector<8x128xf32>
      %39 = arith.maximumf %37, %38 : vector<8x128xf32>
      %c0_23 = arith.constant 0 : index
      %c0_24 = arith.constant 0 : index
      %40 = vector.load %arg6[%c0_23, %c0_24] : memref<8x128xf32, #tpu.memory_space<vmem>>, vector<8x128xf32>
      tpu.vector_store %arg6[%c0_23, %c0_24], %39 {strides = array<i32>} : memref<8x128xf32, #tpu.memory_space<vmem>>, vector<8x128xf32>,
    } else {
    }
    return
  }
  func.func @transform_0(%arg0: i32, %arg1: i32) -> (i32, i32) {
    %c0_i32 = arith.constant 0 : i32
    %c0_i32_0 = arith.constant 0 : i32
    return %c0_i32, %arg1 : i32, i32
  }
  func.func @transform_1(%arg0: i32, %arg1: i32) -> (i32, i32) {
    %c0_i32 = arith.constant 0 : i32
    return %arg1, %arg0 : i32, i32
  }
  func.func @transform_2(%arg0: i32, %arg1: i32) -> (i32, i32) {
    %c0_i32 = arith.constant 0 : i32
    %c0_i32_0 = arith.constant 0 : i32
    return %c0_i32, %arg0 : i32, i32
  }
  func.func @transform_3(%arg0: i32, %arg1: i32) -> (i32, i32) {
    %c0_i32 = arith.constant 0 : i32
    %c0_i32_0 = arith.constant 0 : i32
    return %c0_i32, %arg0 : i32, i32
  }
  func.func @transform_4(%arg0: i32, %arg1: i32) -> (i32, i32) {
    %c0_i32 = arith.constant 0 : i32
    %c0_i32_0 = arith.constant 0 : i32
    return %c0_i32, %arg0 : i32, i32
  }
}

</mosaic_0001>

<llo_original>
// kernel: tpu_custom_call.1
$region0: #{tpu_custom_call.1}
  #allocation0 [shape = 'u32[]', space=smem, size = 0x4, offset = 0x4, fixed_abs, tag = 'smem constant byte address 0x4 - core index']
  #allocation1 [shape = 'u32[72,128]{1,0:T(1,128)}', space=vmem, size = 0x9000, scoped, tag = 'internal scratch']
  %s0 = inlined_call_operand.hbm [shape: f32[8,128], index: 0, kind: input, shape index: {}]
  %s1 = inlined_call_operand.hbm [shape: f32[128,128], index: 1, kind: input, shape index: {}]
  %s2 = inlined_call_operand.vmem [shape: f32[1,128], index: 2, kind: input, shape index: {}]
  %s3 = inlined_call_operand.vmem [shape: f32[1,128], index: 3, kind: input, shape index: {}]
  %s4 = inlined_call_operand.hbm [shape: f32[8,128], index: 4, kind: output, shape index: {}]
  %s5 = sld [smem:[#allocation0]]
  $region42: #{tpu_custom_call.1} parent=0
    _
  %s7 = ssub.s32 1, %s5
  %s8 = scalar_select 0, %s7, %s5
  $region1: #{tpu_custom_call.1} parent=0
    #allocation2 [shape = 'u8[4096]{0}', space=vmem, size = 0x1000, scoped, tag = 'input window, operand 0, single buffered']
    #allocation3 [shape = 's32[1]{0}', space=sflag, size = 0x4, scoped, tag = 'scoped memory for tpu_custom_call.1']
    #allocation4 [shape = 's32[1]{0}', space=sflag, size = 0x4, scoped, tag = 'scoped memory for tpu_custom_call.1']
    #allocation5 [shape = 'u8[65536]{0}', space=vmem, size = 0x10000, scoped, tag = 'input window, operand 1, single buffered']
    #allocation6 [shape = 's32[1]{0}', space=sflag, size = 0x4, scoped, tag = 'scoped memory for tpu_custom_call.1']
    #allocation7 [shape = 'u8[4096]{0}', space=vmem, size = 0x1000, scoped, tag = 'output window, operand 0, single buffered']
    %9 = vsyncpa [#allocation3], 0
    %10 = vsyncpa [#allocation6], 0
    %11 = vsyncpa [#allocation4], 0
    // Predicated region
    $region2: #{tpu_custom_call.1} parent=1 // pred_check
      _
    $region3: #{tpu_custom_call.1} parent=1 // pred_check_branch
      %13 = sbr.rel (0) target = $region5
    $region4: #{tpu_custom_call.1} parent=1 // pred_region
      %15 = vsyncadd [#allocation3], 0
      %s17 = sshll.u32 %s0, 4
      %s18 = int_to_ptr.hbm [resolvable:$true] %s17
      %s19 = sshll.u32 [#allocation2], 4
      %s20 = int_to_ptr.vmem [resolvable:$true] %s19
      %22 = dma.hbm_to_vmem [thread:$0]  %s18, 128, %s20, [#allocation3]
    $region5: #{tpu_custom_call.1} parent=1 // pred_fallthru
      _
    // Predicated region
    $region6: #{tpu_custom_call.1} parent=1 // pred_check
      _
    $region7: #{tpu_custom_call.1} parent=1 // pred_check_branch
      %24 = sbr.rel (0) target = $region9
    $region8: #{tpu_custom_call.1} parent=1 // pred_region
      %26 = vsyncadd [#allocation6], 0
      %s27 = sshll.u32 %s1, 4
      %s28 = int_to_ptr.hbm [resolvable:$true] %s27
      %s29 = sshll.u32 [#allocation5], 4
      %s30 = int_to_ptr.vmem [resolvable:$true] %s29
      %35 = dma.hbm_to_vmem [thread:$0]  %s28, 2048, %s30, [#allocation6], 128, 128, 8
    $region9: #{tpu_custom_call.1} parent=1 // pred_fallthru
      _
    // Predicated region
    $region10: #{tpu_custom_call.1} parent=1 // pred_check
      _
    $region11: #{tpu_custom_call.1} parent=1 // pred_check_branch
      %37 = sbr.rel (0) target = $region13
    $region12: #{tpu_custom_call.1} parent=1 // pred_region
      _
    $region13: #{tpu_custom_call.1} parent=1 // pred_fallthru
      _
    // Predicated region
    $region14: #{tpu_custom_call.1} parent=1 // pred_check
      _
    $region15: #{tpu_custom_call.1} parent=1 // pred_check_branch
      %39 = sbr.rel (0) target = $region17
    $region16: #{tpu_custom_call.1} parent=1 // pred_region
      _
    $region17: #{tpu_custom_call.1} parent=1 // pred_fallthru
      _
    // Predicated region
    $region18: #{tpu_custom_call.1} parent=1 // pred_check
      _
    $region19: #{tpu_custom_call.1} parent=1 // pred_check_branch
      %41 = sbr.rel (0) target = $region21
    $region20: #{tpu_custom_call.1} parent=1 // pred_region
      %43 = dma.done [#allocation3], 128
    $region21: #{tpu_custom_call.1} parent=1 // pred_fallthru
      _
    // Predicated region
    $region22: #{tpu_custom_call.1} parent=1 // pred_check
      _
    $region23: #{tpu_custom_call.1} parent=1 // pred_check_branch
      %45 = sbr.rel (0) target = $region25
    $region24: #{tpu_custom_call.1} parent=1 // pred_region
      %47 = dma.done [#allocation6], 2048
    $region25: #{tpu_custom_call.1} parent=1 // pred_fallthru
      _
    %p48 = scmp.eq.s32.totalorder 0, 0
    // Predicated region
    $region26: #{tpu_custom_call.1} parent=1 // pred_check
      %p49 = pneg %p48
    $region27: #{tpu_custom_call.1} parent=1 // pred_check_branch
      %51 = sbr.rel (%p49) target = $region29
    $region28: #{tpu_custom_call.1} parent=1 // pred_region
      %52 = vst [vmem:[#allocation7] sm:$0xff] 0.0
    $region29: #{tpu_custom_call.1} parent=1 // pred_fallthru
      _
    %v53 = vld [vmem:[#allocation7] sm:$0xff]
    %v54 = vld [vmem:[#allocation2] sm:$0xff]
    %v55 = vld [vmem:[#allocation5] sm:$0xff]
    %v56 = vld [vmem:[#allocation5 + $0x8] sm:$0xff]
    %v57 = vld [vmem:[#allocation5 + $0x10] sm:$0xff]
    %v58 = vld [vmem:[#allocation5 + $0x18] sm:$0xff]
    %v59 = vld [vmem:[#allocation5 + $0x20] sm:$0xff]
    %v60 = vld [vmem:[#allocation5 + $0x28] sm:$0xff]
    %v61 = vld [vmem:[#allocation5 + $0x30] sm:$0xff]
    %v62 = vld [vmem:[#allocation5 + $0x38] sm:$0xff]
    %v63 = vld [vmem:[#allocation5 + $0x40] sm:$0xff]
    %v64 = vld [vmem:[#allocation5 + $0x48] sm:$0xff]
    %v65 = vld [vmem:[#allocation5 + $0x50] sm:$0xff]
    %v66 = vld [vmem:[#allocation5 + $0x58] sm:$0xff]
    %v67 = vld [vmem:[#allocation5 + $0x60] sm:$0xff]
    %v68 = vld [vmem:[#allocation5 + $0x68] sm:$0xff]
    %v69 = vld [vmem:[#allocation5 + $0x70] sm:$0xff]
    %v70 = vld [vmem:[#allocation5 + $0x78] sm:$0xff]
    %71 = vmatpush.msra.mxu0 %v70
    %72 = vmatpush.msra.mxu0 %v69
    %73 = vmatpush.msra.mxu0 %v68
    %74 = vmatpush.msra.mxu0 %v67
    %75 = vmatpush.msra.mxu0 %v66
    %76 = vmatpush.msra.mxu0 %v65
    %77 = vmatpush.msra.mxu0 %v64
    %78 = vmatpush.msra.mxu0 %v63
    %79 = vmatpush.msra.mxu0 %v62
    %80 = vmatpush.msra.mxu0 %v61
    %81 = vmatpush.msra.mxu0 %v60
    %82 = vmatpush.msra.mxu0 %v59
    %83 = vmatpush.msra.mxu0 %v58
    %84 = vmatpush.msra.mxu0 %v57
    %85 = vmatpush.msra.mxu0 %v56
    %86 = vmatpush.msra.mxu0 %v55
    %87 = vmatmul.f32.gmra.mxu0 %v54
    %v88 = vpop.f32.mrf.mxu0
    %v89 = vadd.f32 0.0, %v88
    %90 = vdwg.mxu0
    %v91 = vadd.f32 %v53, %v89
    %92 = vst [vmem:[#allocation7] sm:$0xff] %v91
    // Predicated region
    $region30: #{tpu_custom_call.1} parent=1 // pred_check
      %p93 = pneg %p48
    $region31: #{tpu_custom_call.1} parent=1 // pred_check_branch
      %95 = sbr.rel (%p93) target = $region33
    $region32: #{tpu_custom_call.1} parent=1 // pred_region
      %v96 = vld [vmem:[#allocation7] sm:$0xff]
      %v97 = vrot.slane %v96, 4
      %v98 = vadd.f32 %v96, %v97
      %v99 = vrot.slane %v98, 2
      %v100 = vadd.f32 %v98, %v99
      %v101 = vrot.slane %v100, 1
      %v102 = vadd.f32 %v100, %v101
      %v103 = vmul.f32 %v102, 0.125
      %v104 = vmul.f32 %v96, %v96
      %v105 = vrot.slane %v104, 4
      %v106 = vadd.f32 %v104, %v105
      %v107 = vrot.slane %v106, 2
      %v108 = vadd.f32 %v106, %v107
      %v109 = vrot.slane %v108, 1
      %v110 = vadd.f32 %v108, %v109
      %v111 = vmul.f32 %v110, 0.125
      %v112 = vmul.f32 %v103, %v103
      %v113 = vsub.f32 %v111, %v112
      %v114 = vmax.f32 %v113, 0.0
      %v115 = vld [vmem:[%s2] sm:$0x1]
      %v116 = vadd.f32 %v114, 0.001
      %v117 = vrsqrt.pop %v116
      %v118 = vmul.f32 %v117, %v116
      %v119 = vmul.f32 %v118, %v117
      %v120 = vmul.f32 0.5, %v119
      %v121 = vsub.f32 1.5, %v120
      %v122 = vmul.f32 %v117, %v121
      %vm123 = vweird.f32 %v116
      %vm124 = vweird.f32 %v117
      %vm125 = vmor %vm123, %vm124
      %v126 = vsel %vm125, %v117, %v122
      %v127 = vmul.f32 %v115, %v126
      %v128 = vld [vmem:[%s3] sm:$0x1]
      %v129 = vmul.f32 %v103, %v127
      %v130 = vsub.f32 %v128, %v129
      %v132 = vperm.slane %v127, 0
      %v134 = vmul.f32 %v96, %v132
      %v136 = vperm.slane %v130, 0
      %v138 = vadd.f32 %v134, %v136
      %v139 = vmax.f32 %v138, 0.0
      %140 = vst [vmem:[#allocation7] sm:$0xff] %v139
    $region33: #{tpu_custom_call.1} parent=1 // pred_fallthru
      _
    // Predicated region
    $region34: #{tpu_custom_call.1} parent=1 // pred_check
      _
    $region35: #{tpu_custom_call.1} parent=1 // pred_check_branch
      %142 = sbr.rel (0) target = $region37
    $region36: #{tpu_custom_call.1} parent=1 // pred_region
      %144 = vsyncadd [#allocation4], 0
      %s146 = sshll.u32 [#allocation7], 4
      %s147 = int_to_ptr.vmem [resolvable:$true] %s146
      %s148 = sshll.u32 %s4, 4
      %s149 = int_to_ptr.hbm [resolvable:$true] %s148
      %151 = dma.vmem_to_hbm [thread:$0]  %s147, 128, %s149, [#allocation4]
    $region37: #{tpu_custom_call.1} parent=1 // pred_fallthru
      _
    // Predicated region
    $region38: #{tpu_custom_call.1} parent=1 // pred_check
      _
    $region39: #{tpu_custom_call.1} parent=1 // pred_check_branch
      %153 = sbr.rel (0) target = $region41
    $region40: #{tpu_custom_call.1} parent=1 // pred_region
      %155 = dma.done [#allocation4], 128
    $region41: #{tpu_custom_call.1} parent=1 // pred_fallthru
      _
    %156 = vsyncpa [#allocation3], 1
    %157 = vsyncpa [#allocation6], 1
    %158 = vsyncpa [#allocation4], 1

</llo_original>
